<compile_context>
chip_gen: v6e
topology: v6e:2x2x1
jax: 0.10.0
libtpu: 0.0.40
codegen_flags: <defaults>
</compile_context>

<pallas_src>
import math

import jax
import jax.numpy as jnp
from jax.experimental import pallas as pl
from jax.experimental.pallas import tpu as pltpu

_SQRT_2_OVER_PI = math.sqrt(2.0 / math.pi)
_COEFF = 0.44715  # matches the reference module exactly (NOT 0.044715)

_LANE = 128
_C = 4 * _LANE                    # lane-dense repack width (512)
_TARGET_BLOCK_BYTES = 2 << 20     # ~2 MiB per block -> ~8 MiB of double buffers


def _gelu_kernel(x_ref, o_ref):
    x = x_ref[...]
    xf = x.astype(jnp.float32)
    # x + c*x^3 == x * (1 + c*x^2)   (one fewer VALU mul)
    inner = (_SQRT_2_OVER_PI * xf) * (1.0 + _COEFF * xf * xf)
    y = 0.5 * xf * (1.0 + jnp.tanh(inner))
    o_ref[...] = y.astype(o_ref.dtype)


def gelu(x):
    """Elementwise tanh-GELU, computed in a Pallas TPU kernel."""
    orig_shape = x.shape
    n = x.size
    if n == 0:
        return x

    itemsize = jnp.dtype(x.dtype).itemsize
    # sublane granularity: 8 rows for f32, 16 for bf16, 32 for int8/fp8
    sub = max(8, 32 // itemsize)

    # ---- repack: flat -> (R, _C), R a multiple of `sub` -------------------
    flat = x.reshape(-1)
    rows = pl.cdiv(n, _C)
    rows = ((rows + sub - 1) // sub) * sub

    # ---- row tile: ~_TARGET_BLOCK_BYTES, multiple of `sub` ----------------
    tr = max(sub, (_TARGET_BLOCK_BYTES // (_C * itemsize)) // sub * sub)
    tr = min(tr, rows)
    if tr == rows and rows >= 2 * sub:
        # prefer >= 2 grid steps so both v7x TensorCores get work
        tr = max(sub, ((rows // 2) // sub) * sub)

    rows_pad = ((rows + tr - 1) // tr) * tr
    n_pad = rows_pad * _C
    if n_pad != n:
        flat = jnp.pad(flat, (0, n_pad - n))
    x2d = flat.reshape(rows_pad, _C)

    grid = (rows_pad // tr,)

    cost = pl.CostEstimate(
        flops=7 * n_pad,
        transcendentals=n_pad,
        bytes_accessed=2 * n_pad * itemsize,
    )

    out2d = pl.pallas_call(
        _gelu_kernel,
        out_shape=jax.ShapeDtypeStruct((rows_pad, _C), x.dtype),
        grid_spec=pltpu.PrefetchScalarGridSpec(
            num_scalar_prefetch=0,
            grid=grid,
            in_specs=[pl.BlockSpec((tr, _C), lambda i: (i, 0))],
            out_specs=pl.BlockSpec((tr, _C), lambda i: (i, 0)),
        ),
        compiler_params=pltpu.CompilerParams(
            dimension_semantics=("parallel",),
        ),
        cost_estimate=cost,
    )(x2d)

    return out2d.reshape(-1)[:n].reshape(orig_shape)


def _gelu_reference(x):
    xf = x.astype(jnp.float32)
    return (
        0.5 * xf * (1.0 + jnp.tanh(_SQRT_2_OVER_PI * (xf + _COEFF * xf ** 3)))
    ).astype(x.dtype)


if __name__ == "__main__":
    key = jax.random.PRNGKey(0)
    k1, k2 = jax.random.split(key)

    # (batch=2, seq=8, hidden=128) — aligned path
    x1 = jax.random.normal(k1, (2, 8, 128), dtype=jnp.float32)
    y1 = gelu(x1)
    jax.block_until_ready(y1)
    assert y1.shape == x1.shape and y1.dtype == x1.dtype
    assert jnp.allclose(y1, _gelu_reference(x1), atol=1e-5, rtol=1e-5)

    # ragged shape — exercises the pad/repack path
    x2 = jax.random.normal(k2, (3, 7, 33), dtype=jnp.float32)
    y2 = gelu(x2)
    jax.block_until_ready(y2)
    assert y2.shape == x2.shape and y2.dtype == x2.dtype
    assert jnp.allclose(y2, _gelu_reference(x2), atol=1e-5, rtol=1e-5)

    print("KERNEL_OK")
</pallas_src>

<mosaic_0001>
module attributes {stable_mosaic.version = 11 : i64} {
  func.func @_gelu_kernel(%arg0: i32, %arg1: memref<8x512xf32, #tpu.memory_space<vmem>>, %arg2: memref<8x512xf32, #tpu.memory_space<vmem>>) attributes {dimension_semantics = [#tpu.dimension_semantics<parallel>], iteration_bounds = array<i64: 1>, scalar_prefetch = 0 : i64, scratch_operands = 0 : i64, tpu.core_type = #tpu.core_type<tc>, window_params = [{transform_indices = @transform_0, window_bounds = array<i64: 8, 512>}, {transform_indices = @transform_1, window_bounds = array<i64: 8, 512>}]} {
    %c0 = arith.constant 0 : index
    %c0_0 = arith.constant 0 : index
    %0 = vector.load %arg1[%c0, %c0_0] : memref<8x512xf32, #tpu.memory_space<vmem>>, vector<8x512xf32>
    %cst = arith.constant 0.797884583 : f32
    %1 = vector.broadcast %cst : f32 to vector<8x512xf32>
    %2 = arith.mulf %1, %0 : vector<8x512xf32>
    %cst_1 = arith.constant 4.471500e-01 : f32
    %3 = vector.broadcast %cst_1 : f32 to vector<8x512xf32>
    %4 = arith.mulf %3, %0 : vector<8x512xf32>
    %5 = arith.mulf %4, %0 : vector<8x512xf32>
    %cst_2 = arith.constant 1.000000e+00 : f32
    %6 = vector.broadcast %cst_2 : f32 to vector<8x512xf32>
    %7 = arith.addf %6, %5 : vector<8x512xf32>
    %8 = arith.mulf %2, %7 : vector<8x512xf32>
    %cst_3 = arith.constant 5.000000e-01 : f32
    %9 = vector.broadcast %cst_3 : f32 to vector<8x512xf32>
    %10 = arith.mulf %9, %0 : vector<8x512xf32>
    %11 = math.tanh %8 : vector<8x512xf32>
    %cst_4 = arith.constant 1.000000e+00 : f32
    %12 = vector.broadcast %cst_4 : f32 to vector<8x512xf32>
    %13 = arith.addf %12, %11 : vector<8x512xf32>
    %14 = arith.mulf %10, %13 : vector<8x512xf32>
    %c0_5 = arith.constant 0 : index
    %c0_6 = arith.constant 0 : index
    %15 = vector.load %arg2[%c0_5, %c0_6] : memref<8x512xf32, #tpu.memory_space<vmem>>, vector<8x512xf32>
    tpu.vector_store %arg2[%c0_5, %c0_6], %14 {strides = array<i32>} : memref<8x512xf32, #tpu.memory_space<vmem>>, vector<8x512xf32>,
    return
  }
  func.func @transform_0(%arg0: i32) -> (i32, i32) {
    %c0_i32 = arith.constant 0 : i32
    %c0_i32_0 = arith.constant 0 : i32
    return %arg0, %c0_i32 : i32, i32
  }
  func.func @transform_1(%arg0: i32) -> (i32, i32) {
    %c0_i32 = arith.constant 0 : i32
    %c0_i32_0 = arith.constant 0 : i32
    return %arg0, %c0_i32 : i32, i32
  }
}

</mosaic_0001>

<llo_original>
// kernel: tpu_custom_call.1
$region0: #{tpu_custom_call.1}
  #allocation0 [shape = 'u32[]', space=smem, size = 0x4, offset = 0x4, fixed_abs, tag = 'smem constant byte address 0x4 - core index']
  #allocation1 [shape = 'u32[144,128]{1,0:T(1,128)}', space=vmem, size = 0x12000, scoped, tag = 'internal scratch']
  %s0 = inlined_call_operand.hbm [shape: f32[8,512], index: 0, kind: input, shape index: {}]
  %s1 = inlined_call_operand.hbm [shape: f32[8,512], index: 1, kind: output, shape index: {}]
  %s2 = sld [smem:[#allocation0]]
  $region18: #{tpu_custom_call.1} parent=0
    _
  %s4 = ssub.s32 1, %s2
  %s5 = scalar_select 0, %s4, %s2
  $region1: #{tpu_custom_call.1} parent=0
    #allocation2 [shape = 'u8[16384]{0}', space=vmem, size = 0x4000, scoped, tag = 'input window, operand 0, single buffered']
    #allocation3 [shape = 's32[1]{0}', space=sflag, size = 0x4, scoped, tag = 'scoped memory for tpu_custom_call.1']
    #allocation4 [shape = 's32[1]{0}', space=sflag, size = 0x4, scoped, tag = 'scoped memory for tpu_custom_call.1']
    #allocation5 [shape = 'u8[16384]{0}', space=vmem, size = 0x4000, scoped, tag = 'output window, operand 0, single buffered']
    %6 = vsyncpa [#allocation3], 0
    %7 = vsyncpa [#allocation4], 0
    // Predicated region
    $region2: #{tpu_custom_call.1} parent=1 // pred_check
      _
    $region3: #{tpu_custom_call.1} parent=1 // pred_check_branch
      %9 = sbr.rel (0) target = $region5
    $region4: #{tpu_custom_call.1} parent=1 // pred_region
      %s11 = ssub.s32 512, 512
      %12 = vsyncadd [#allocation3], %s11
      %s14 = sshll.u32 [#allocation2], 4
      %s15 = int_to_ptr.vmem [resolvable:$true] %s14
      %17 = dma.hbm_to_vmem [thread:$0]  %s0, 512, %s15, [#allocation3]
    $region5: #{tpu_custom_call.1} parent=1 // pred_fallthru
      _
    // Predicated region
    $region6: #{tpu_custom_call.1} parent=1 // pred_check
      _
    $region7: #{tpu_custom_call.1} parent=1 // pred_check_branch
      %19 = sbr.rel (0) target = $region9
    $region8: #{tpu_custom_call.1} parent=1 // pred_region
      %20 = dma.done [#allocation3], 512
    $region9: #{tpu_custom_call.1} parent=1 // pred_fallthru
      _
    %v21 = vld [vmem:[#allocation2] sm:$0xff]
    %v22 = vld [vmem:[#allocation2 + $0x8] sm:$0xff]
    %v23 = vld [vmem:[#allocation2 + $0x10] sm:$0xff]
    %v24 = vld [vmem:[#allocation2 + $0x18] sm:$0xff]
    %v25 = vmul.f32 %v21, 0.7978846
    %v26 = vmul.f32 %v22, 0.7978846
    %v27 = vmul.f32 %v23, 0.7978846
    %v28 = vmul.f32 %v24, 0.7978846
    %v29 = vmul.f32 %v21, 0.44715
    %v30 = vmul.f32 %v22, 0.44715
    %v31 = vmul.f32 %v23, 0.44715
    %v32 = vmul.f32 %v24, 0.44715
    %v33 = vmul.f32 %v29, %v21
    %v34 = vmul.f32 %v30, %v22
    %v35 = vmul.f32 %v31, %v23
    %v36 = vmul.f32 %v32, %v24
    %v37 = vadd.f32 %v33, 1.0
    %v38 = vadd.f32 %v34, 1.0
    %v39 = vadd.f32 %v35, 1.0
    %v40 = vadd.f32 %v36, 1.0
    %v41 = vmul.f32 %v25, %v37
    %v42 = vmul.f32 %v26, %v38
    %v43 = vmul.f32 %v27, %v39
    %v44 = vmul.f32 %v28, %v40
    %v45 = vmul.f32 %v21, 0.5
    %v46 = vmul.f32 %v22, 0.5
    %v47 = vmul.f32 %v23, 0.5
    %v48 = vmul.f32 %v24, 0.5
    %v49 = vtanh.pop %v41
    %v50 = vtanh.pop %v42
    %v51 = vtanh.pop %v43
    %v52 = vtanh.pop %v44
    %v53 = vadd.f32 %v49, 1.0
    %v54 = vadd.f32 %v50, 1.0
    %v55 = vadd.f32 %v51, 1.0
    %v56 = vadd.f32 %v52, 1.0
    %v57 = vmul.f32 %v45, %v53
    %v58 = vmul.f32 %v46, %v54
    %v59 = vmul.f32 %v47, %v55
    %v60 = vmul.f32 %v48, %v56
    %61 = vst [vmem:[#allocation5] sm:$0xff] %v57
    %62 = vst [vmem:[#allocation5 + $0x8] sm:$0xff] %v58
    %63 = vst [vmem:[#allocation5 + $0x10] sm:$0xff] %v59
    %64 = vst [vmem:[#allocation5 + $0x18] sm:$0xff] %v60
    // Predicated region
    $region10: #{tpu_custom_call.1} parent=1 // pred_check
      _
    $region11: #{tpu_custom_call.1} parent=1 // pred_check_branch
      %66 = sbr.rel (0) target = $region13
    $region12: #{tpu_custom_call.1} parent=1 // pred_region
      %s68 = ssub.s32 512, 512
      %69 = vsyncadd [#allocation4], %s68
      %s71 = sshll.u32 [#allocation5], 4
      %s72 = int_to_ptr.vmem [resolvable:$true] %s71
      %74 = dma.vmem_to_hbm [thread:$0]  %s72, 512, %s1, [#allocation4]
    $region13: #{tpu_custom_call.1} parent=1 // pred_fallthru
      _
    // Predicated region
    $region14: #{tpu_custom_call.1} parent=1 // pred_check
      _
    $region15: #{tpu_custom_call.1} parent=1 // pred_check_branch
      %76 = sbr.rel (0) target = $region17
    $region16: #{tpu_custom_call.1} parent=1 // pred_region
      %77 = dma.done [#allocation4], 512
    $region17: #{tpu_custom_call.1} parent=1 // pred_fallthru
      _
    %78 = vsyncpa [#allocation3], 1
    %79 = vsyncpa [#allocation4], 1

</llo_original>
